<compile_context>
chip_gen: v7x
topology: tpu7x:2x2x1
jax: 0.10.0
libtpu: 0.0.40
codegen_flags: <defaults>
</compile_context>

<pallas_src>
import jax
import jax.numpy as jnp
import numpy as np
from jax.experimental import pallas as pl
from jax.experimental.pallas import tpu as pltpu

# Model hyper-parameters (small, consistent with the module's __init__).
N_HEAD = 4
D_MODEL = 32      # d_input
D_K = 8
D_V = 8
D_INNER = 64
D_PATCH = 64      # d_img_patch
N_LAYERS = 2
N_POSITION = 200
LN_EPS = 1e-6


def _layer_norm(x, gamma, beta):
    """LayerNorm over the last axis (population variance, eps inside sqrt)."""
    mean = jnp.mean(x, axis=-1, keepdims=True)
    var = jnp.mean((x - mean) ** 2, axis=-1, keepdims=True)
    return (x - mean) * jax.lax.rsqrt(var + jnp.float32(LN_EPS)) * gamma + beta


# --------------------------------------------------------------------------
# Kernel 1: compressor Linear + positional encoding + LayerNorm
# --------------------------------------------------------------------------
def embed_kernel(x_ref, wc_ref, bc_ref, pos_ref, ln_g_ref, ln_b_ref, out_ref):
    """x_ref: (BT, L, P); wc: (P, D); bc/ln_g/ln_b: (1, D); pos: (L, D)."""
    BT, L, P = x_ref.shape
    D = wc_ref.shape[1]

    # Flatten batch tile into the matmul M dim (single (BT*L, P) @ (P, D)).
    x2 = x_ref[...].reshape(BT * L, P).astype(jnp.float32)
    y = jnp.dot(x2, wc_ref[...], preferred_element_type=jnp.float32) + bc_ref[...]

    # Positional encoding (broadcast over the batch tile).
    y = y.reshape(BT, L, D) + pos_ref[...]
    # TODO(synk): ImageEncoder.dropout omitted (eval-mode identity).

    y = _layer_norm(y, ln_g_ref[...], ln_b_ref[...])
    out_ref[...] = y.astype(out_ref.dtype)


# --------------------------------------------------------------------------
# Kernel 2: one EncoderLayer (self-attention MHA + position-wise FFN)
# --------------------------------------------------------------------------
def encoder_layer_kernel(x_ref, wqkv_ref, wo_ref,
                         ln1_g_ref, ln1_b_ref,
                         w1_ref, b1_ref, w2_ref, b2_ref,
                         ln2_g_ref, ln2_b_ref, out_ref):
    """x_ref: (BT, L, D).

    wqkv: (D, 2*H*dk + H*dv) -- [wq*inv_temp | wk | wv] concatenated.
    wo:   (H*dv, D); w1: (D, D_INNER); w2: (D_INNER, D); biases/LN: (1, ·).
    """
    BT, L, D = x_ref.shape
    x2 = x_ref[...].reshape(BT * L, D).astype(jnp.float32)

    # Fused QKV projection: one (BT*L, D) @ (D, 3*H*dk) matmul (q == k == v).
    # The 1/sqrt(d_k) temperature is already folded into the Q columns.
    qkv = jnp.dot(x2, wqkv_ref[...], preferred_element_type=jnp.float32)

    HDK = N_HEAD * D_K
    wo = wo_ref[...]

    # Residual accumulator.  Each head's context is folded into the output via
    # the matching row-slice of W_o:  concat(ctx_h) @ W_o == sum_h ctx_h @ W_o[h]
    # (avoids cross-lane concatenates; attention is batched over the batch tile).
    o = x2
    for h in range(N_HEAD):
        qh = qkv[:, h * D_K:(h + 1) * D_K].reshape(BT, L, D_K)
        kh = qkv[:, HDK + h * D_K:HDK + (h + 1) * D_K].reshape(BT, L, D_K)
        vh = qkv[:, 2 * HDK + h * D_V:2 * HDK + (h + 1) * D_V].reshape(BT, L, D_V)

        # scores = (Q / temp) @ K^T   (temp pre-folded into wqkv).
        s = jnp.einsum('bqd,bkd->bqk', qh, kh,
                       preferred_element_type=jnp.float32)        # (BT, L, L)
        # TODO(synk): src_mask not supported (mask=None path only).
        s_max = jnp.max(s, axis=-1, keepdims=True)
        e = jnp.exp(s - s_max)
        attn = e / jnp.sum(e, axis=-1, keepdims=True)
        # TODO(synk): attn_dropout omitted (eval-mode identity).

        ctx = jnp.einsum('bqk,bkd->bqd', attn, vh,
                         preferred_element_type=jnp.float32)      # (BT, L, dv)
        o = o + jnp.dot(ctx.reshape(BT * L, D_V),
                        wo[h * D_V:(h + 1) * D_V, :],
                        preferred_element_type=jnp.float32)

    # TODO(synk): MHA output dropout omitted (eval-mode identity).
    y = _layer_norm(o, ln1_g_ref[...], ln1_b_ref[...])            # (BT*L, D)

    # Position-wise FFN over the flattened rows.
    hid = jnp.dot(y, w1_ref[...], preferred_element_type=jnp.float32) + b1_ref[...]
    hid = jnp.maximum(hid, 0.0)
    f = jnp.dot(hid, w2_ref[...], preferred_element_type=jnp.float32) + b2_ref[...]
    # TODO(synk): FFN dropout omitted (eval-mode identity).
    f = f + y
    out = _layer_norm(f, ln2_g_ref[...], ln2_b_ref[...])

    out_ref[...] = out.reshape(BT, L, D).astype(out_ref.dtype)


# --------------------------------------------------------------------------
# Host-side wrapper
# --------------------------------------------------------------------------
def _rep_spec(shape):
    """Resident (grid-invariant) full-array block."""
    return pl.BlockSpec(shape, lambda b, _n=len(shape): (0,) * _n)


def prepare_kernel_params(params):
    """Fold the softmax temperature into the Q weights and fuse wq|wk|wv."""
    inv_temp = np.float32(1.0 / np.sqrt(D_K))
    layers = []
    for lp in params['layers']:
        wqkv = jnp.concatenate([lp['wq'] * inv_temp, lp['wk'], lp['wv']], axis=1)
        nlp = dict(lp)
        nlp['wqkv'] = wqkv
        layers.append(nlp)
    out = dict(params)
    out['layers'] = layers
    return out


def image_encoder(img, kparams, pos_table, *, b_tile=None):
    """Forward pass of ImageEncoder (return_attns=False, eval mode)."""
    B, L, P = img.shape
    D = kparams['wc'].shape[1]
    if b_tile is None:
        # Keep >= 2 parallel grid steps so both TensorCores get work on v7x,
        # while folding as much of the batch as possible into each matmul.
        b_tile = max(1, B // 2)
    assert B % b_tile == 0
    grid = (B // b_tile,)
    cparams = pltpu.CompilerParams(dimension_semantics=("parallel",))

    pos = pos_table[:L]

    # --- compressor + positional encoding + LayerNorm -----------------------
    x = pl.pallas_call(
        embed_kernel,
        out_shape=jax.ShapeDtypeStruct((B, L, D), jnp.float32),
        grid=grid,
        in_specs=[
            pl.BlockSpec((b_tile, L, P), lambda b: (b, 0, 0)),
            _rep_spec(kparams['wc'].shape),
            _rep_spec(kparams['bc'].shape),
            _rep_spec((L, D)),
            _rep_spec(kparams['ln0_g'].shape),
            _rep_spec(kparams['ln0_b'].shape),
        ],
        out_specs=pl.BlockSpec((b_tile, L, D), lambda b: (b, 0, 0)),
        compiler_params=cparams,
    )(img, kparams['wc'], kparams['bc'], pos, kparams['ln0_g'], kparams['ln0_b'])

    # --- encoder layers ------------------------------------------------------
    for lp in kparams['layers']:
        x = pl.pallas_call(
            encoder_layer_kernel,
            out_shape=jax.ShapeDtypeStruct((B, L, D), jnp.float32),
            grid=grid,
            in_specs=[
                pl.BlockSpec((b_tile, L, D), lambda b: (b, 0, 0)),
                _rep_spec(lp['wqkv'].shape),
                _rep_spec(lp['wo'].shape),
                _rep_spec(lp['ln1_g'].shape),
                _rep_spec(lp['ln1_b'].shape),
                _rep_spec(lp['w1'].shape),
                _rep_spec(lp['b1'].shape),
                _rep_spec(lp['w2'].shape),
                _rep_spec(lp['b2'].shape),
                _rep_spec(lp['ln2_g'].shape),
                _rep_spec(lp['ln2_b'].shape),
            ],
            out_specs=pl.BlockSpec((b_tile, L, D), lambda b: (b, 0, 0)),
            compiler_params=cparams,
        )(x, lp['wqkv'], lp['wo'], lp['ln1_g'], lp['ln1_b'],
          lp['w1'], lp['b1'], lp['w2'], lp['b2'], lp['ln2_g'], lp['ln2_b'])
    return x


# --------------------------------------------------------------------------
# Pure-JAX reference mirroring the PyTorch forward (eval mode, no mask)
# --------------------------------------------------------------------------
def sinusoid_table(n_position, d_hid):
    def angle_vec(pos):
        return [pos / np.power(10000, 2 * (j // 2) / d_hid) for j in range(d_hid)]
    table = np.array([angle_vec(p) for p in range(n_position)], dtype=np.float64)
    table[:, 0::2] = np.sin(table[:, 0::2])
    table[:, 1::2] = np.cos(table[:, 1::2])
    return jnp.asarray(table, dtype=jnp.float32)


def ref_image_encoder(img, params, pos_table):
    def ln(x, g, b):
        m = x.mean(-1, keepdims=True)
        v = ((x - m) ** 2).mean(-1, keepdims=True)
        return (x - m) / jnp.sqrt(v + LN_EPS) * g + b

    x = img @ params['wc'] + params['bc']
    x = x + pos_table[None, :x.shape[1]]
    x = ln(x, params['ln0_g'], params['ln0_b'])
    B, L, D = x.shape
    for lp in params['layers']:
        res = x
        Q = (x @ lp['wq']).reshape(B, L, N_HEAD, D_K).transpose(0, 2, 1, 3)
        K = (x @ lp['wk']).reshape(B, L, N_HEAD, D_K).transpose(0, 2, 1, 3)
        V = (x @ lp['wv']).reshape(B, L, N_HEAD, D_V).transpose(0, 2, 1, 3)
        s = jnp.einsum('bhqd,bhkd->bhqk', Q / (D_K ** 0.5), K)
        a = jax.nn.softmax(s, axis=-1)
        ctx = jnp.einsum('bhqk,bhkd->bhqd', a, V)
        ctx = ctx.transpose(0, 2, 1, 3).reshape(B, L, N_HEAD * D_V)
        x = ln(ctx @ lp['wo'] + res, lp['ln1_g'], lp['ln1_b'])
        res = x
        h = jax.nn.relu(x @ lp['w1'] + lp['b1'])
        x = ln(h @ lp['w2'] + lp['b2'] + res, lp['ln2_g'], lp['ln2_b'])
    return x


# --------------------------------------------------------------------------
if __name__ == "__main__":
    key = jax.random.PRNGKey(0)
    keys = iter(jax.random.split(key, 64))

    def nrm(shape, scale=1.0):
        return jax.random.normal(next(keys), shape, dtype=jnp.float32) * scale

    B, L = 2, 8
    img = nrm((B, L, D_PATCH), 1.0)

    params = {
        'wc': nrm((D_PATCH, D_MODEL), 1.0 / np.sqrt(D_PATCH)),
        'bc': nrm((1, D_MODEL), 0.1),
        'ln0_g': 1.0 + nrm((1, D_MODEL), 0.1),
        'ln0_b': nrm((1, D_MODEL), 0.1),
        'layers': [],
    }
    for _ in range(N_LAYERS):
        params['layers'].append({
            'wq': nrm((D_MODEL, N_HEAD * D_K), 1.0 / np.sqrt(D_MODEL)),
            'wk': nrm((D_MODEL, N_HEAD * D_K), 1.0 / np.sqrt(D_MODEL)),
            'wv': nrm((D_MODEL, N_HEAD * D_V), 1.0 / np.sqrt(D_MODEL)),
            'wo': nrm((N_HEAD * D_V, D_MODEL), 1.0 / np.sqrt(N_HEAD * D_V)),
            'ln1_g': 1.0 + nrm((1, D_MODEL), 0.1),
            'ln1_b': nrm((1, D_MODEL), 0.1),
            'w1': nrm((D_MODEL, D_INNER), 1.0 / np.sqrt(D_MODEL)),
            'b1': nrm((1, D_INNER), 0.1),
            'w2': nrm((D_INNER, D_MODEL), 1.0 / np.sqrt(D_INNER)),
            'b2': nrm((1, D_MODEL), 0.1),
            'ln2_g': 1.0 + nrm((1, D_MODEL), 0.1),
            'ln2_b': nrm((1, D_MODEL), 0.1),
        })

    pos_table = sinusoid_table(N_POSITION, D_MODEL)
    kparams = prepare_kernel_params(params)

    out = image_encoder(img, kparams, pos_table)
    out = jax.block_until_ready(out)

    out_ref = ref_image_encoder(img, params, pos_table)
    np.testing.assert_allclose(np.asarray(out), np.asarray(out_ref),
                               rtol=1e-4, atol=1e-4)

    print("KERNEL_OK")
</pallas_src>

<mosaic_0001>
module attributes {stable_mosaic.version = 11 : i64} {
  func.func @embed_kernel(%arg0: i32, %arg1: memref<1x8x64xf32, #tpu.memory_space<vmem>>, %arg2: memref<64x32xf32, #tpu.memory_space<vmem>>, %arg3: memref<1x32xf32, #tpu.memory_space<vmem>>, %arg4: memref<8x32xf32, #tpu.memory_space<vmem>>, %arg5: memref<1x32xf32, #tpu.memory_space<vmem>>, %arg6: memref<1x32xf32, #tpu.memory_space<vmem>>, %arg7: memref<1x8x32xf32, #tpu.memory_space<vmem>>) attributes {dimension_semantics = [#tpu.dimension_semantics<parallel>], iteration_bounds = array<i64: 2>, scalar_prefetch = 0 : i64, scratch_operands = 0 : i64, tpu.core_type = #tpu.core_type<tc>, window_params = [{transform_indices = @transform_0, window_bounds = array<i64: 1, 8, 64>}, {pipeline_mode = #tpu.pipeline_mode<synchronous>, transform_indices = @transform_1, window_bounds = array<i64: 64, 32>}, {pipeline_mode = #tpu.pipeline_mode<synchronous>, transform_indices = @transform_2, window_bounds = array<i64: 1, 32>}, {pipeline_mode = #tpu.pipeline_mode<synchronous>, transform_indices = @transform_3, window_bounds = array<i64: 8, 32>}, {pipeline_mode = #tpu.pipeline_mode<synchronous>, transform_indices = @transform_4, window_bounds = array<i64: 1, 32>}, {pipeline_mode = #tpu.pipeline_mode<synchronous>, transform_indices = @transform_5, window_bounds = array<i64: 1, 32>}, {transform_indices = @transform_6, window_bounds = array<i64: 1, 8, 32>}]} {
    %c0 = arith.constant 0 : index
    %c0_0 = arith.constant 0 : index
    %c0_1 = arith.constant 0 : index
    %0 = vector.load %arg1[%c0, %c0_0, %c0_1] : memref<1x8x64xf32, #tpu.memory_space<vmem>>, vector<1x8x64xf32>
    %1 = vector.shape_cast %0 : vector<1x8x64xf32> to vector<8x64xf32>
    %c0_2 = arith.constant 0 : index
    %c0_3 = arith.constant 0 : index
    %2 = vector.load %arg2[%c0_2, %c0_3] : memref<64x32xf32, #tpu.memory_space<vmem>>, vector<64x32xf32>
    %cst = arith.constant dense<0.000000e+00> : vector<8x32xf32>
    %3 = tpu.matmul %1, %2, %cst {dimension_numbers = #tpu.dot_dimension_numbers<[1], [0], [0], [1], [0, 0, 1, 1], [], []>} : vector<8x64xf32>, vector<64x32xf32>, vector<8x32xf32> -> vector<8x32xf32>
    %c0_4 = arith.constant 0 : index
    %c0_5 = arith.constant 0 : index
    %4 = vector.load %arg3[%c0_4, %c0_5] : memref<1x32xf32, #tpu.memory_space<vmem>>, vector<1x32xf32>
    %5 = vector.broadcast %4 : vector<1x32xf32> to vector<8x32xf32>
    %6 = arith.addf %3, %5 : vector<8x32xf32>
    %7 = vector.shape_cast %6 : vector<8x32xf32> to vector<1x8x32xf32>
    %c0_6 = arith.constant 0 : index
    %c0_7 = arith.constant 0 : index
    %8 = vector.load %arg4[%c0_6, %c0_7] : memref<8x32xf32, #tpu.memory_space<vmem>>, vector<8x32xf32>
    %9 = vector.shape_cast %8 : vector<8x32xf32> to vector<1x8x32xf32>
    %10 = arith.addf %7, %9 : vector<1x8x32xf32>
    %c0_8 = arith.constant 0 : index
    %c0_9 = arith.constant 0 : index
    %11 = vector.load %arg5[%c0_8, %c0_9] : memref<1x32xf32, #tpu.memory_space<vmem>>, vector<1x32xf32>
    %c0_10 = arith.constant 0 : index
    %c0_11 = arith.constant 0 : index
    %12 = vector.load %arg6[%c0_10, %c0_11] : memref<1x32xf32, #tpu.memory_space<vmem>>, vector<1x32xf32>
    %cst_12 = arith.constant dense<0.000000e+00> : vector<1x8xf32>
    %13 = vector.multi_reduction <add>, %10, %cst_12 [2] : vector<1x8x32xf32> to vector<1x8xf32>
    %14 = vector.shape_cast %13 : vector<1x8xf32> to vector<1x8x1xf32>
    %cst_13 = arith.constant 3.200000e+01 : f32
    %15 = vector.broadcast %cst_13 : f32 to vector<1x8x1xf32>
    %16 = arith.divf %14, %15 : vector<1x8x1xf32>
    %17 = vector.broadcast %16 : vector<1x8x1xf32> to vector<1x8x32xf32>
    %18 = arith.subf %10, %17 : vector<1x8x32xf32>
    %19 = arith.mulf %18, %18 : vector<1x8x32xf32>
    %cst_14 = arith.constant dense<0.000000e+00> : vector<1x8xf32>
    %20 = vector.multi_reduction <add>, %19, %cst_14 [2] : vector<1x8x32xf32> to vector<1x8xf32>
    %21 = vector.shape_cast %20 : vector<1x8xf32> to vector<1x8x1xf32>
    %cst_15 = arith.constant 3.200000e+01 : f32
    %22 = vector.broadcast %cst_15 : f32 to vector<1x8x1xf32>
    %23 = arith.divf %21, %22 : vector<1x8x1xf32>
    %24 = vector.broadcast %16 : vector<1x8x1xf32> to vector<1x8x32xf32>
    %25 = arith.subf %10, %24 : vector<1x8x32xf32>
    %cst_16 = arith.constant 9.99999997E-7 : f32
    %26 = vector.broadcast %cst_16 : f32 to vector<1x8x1xf32>
    %27 = arith.addf %23, %26 : vector<1x8x1xf32>
    %28 = math.rsqrt %27 : vector<1x8x1xf32>
    %29 = vector.broadcast %28 : vector<1x8x1xf32> to vector<1x8x32xf32>
    %30 = arith.mulf %25, %29 : vector<1x8x32xf32>
    %31 = vector.shape_cast %11 : vector<1x32xf32> to vector<1x1x32xf32>
    %32 = vector.broadcast %31 : vector<1x1x32xf32> to vector<1x8x32xf32>
    %33 = arith.mulf %30, %32 : vector<1x8x32xf32>
    %34 = vector.shape_cast %12 : vector<1x32xf32> to vector<1x1x32xf32>
    %35 = vector.broadcast %34 : vector<1x1x32xf32> to vector<1x8x32xf32>
    %36 = arith.addf %33, %35 : vector<1x8x32xf32>
    %c0_17 = arith.constant 0 : index
    %c0_18 = arith.constant 0 : index
    %c0_19 = arith.constant 0 : index
    %37 = vector.load %arg7[%c0_17, %c0_18, %c0_19] : memref<1x8x32xf32, #tpu.memory_space<vmem>>, vector<1x8x32xf32>
    tpu.vector_store %arg7[%c0_17, %c0_18, %c0_19], %36 {strides = array<i32>} : memref<1x8x32xf32, #tpu.memory_space<vmem>>, vector<1x8x32xf32>,
    return
  }
  func.func @transform_0(%arg0: i32) -> (i32, i32, i32) {
    %c0_i32 = arith.constant 0 : i32
    %c0_i32_0 = arith.constant 0 : i32
    %c0_i32_1 = arith.constant 0 : i32
    return %arg0, %c0_i32, %c0_i32_0 : i32, i32, i32
  }
  func.func @transform_1(%arg0: i32) -> (i32, i32) {
    %c0_i32 = arith.constant 0 : i32
    %c0_i32_0 = arith.constant 0 : i32
    %c0_i32_1 = arith.constant 0 : i32
    return %c0_i32, %c0_i32_0 : i32, i32
  }
  func.func @transform_2(%arg0: i32) -> (i32, i32) {
    %c0_i32 = arith.constant 0 : i32
    %c0_i32_0 = arith.constant 0 : i32
    %c0_i32_1 = arith.constant 0 : i32
    return %c0_i32, %c0_i32_0 : i32, i32
  }
  func.func @transform_3(%arg0: i32) -> (i32, i32) {
    %c0_i32 = arith.constant 0 : i32
    %c0_i32_0 = arith.constant 0 : i32
    %c0_i32_1 = arith.constant 0 : i32
    return %c0_i32, %c0_i32_0 : i32, i32
  }
  func.func @transform_4(%arg0: i32) -> (i32, i32) {
    %c0_i32 = arith.constant 0 : i32
    %c0_i32_0 = arith.constant 0 : i32
    %c0_i32_1 = arith.constant 0 : i32
    return %c0_i32, %c0_i32_0 : i32, i32
  }
  func.func @transform_5(%arg0: i32) -> (i32, i32) {
    %c0_i32 = arith.constant 0 : i32
    %c0_i32_0 = arith.constant 0 : i32
    %c0_i32_1 = arith.constant 0 : i32
    return %c0_i32, %c0_i32_0 : i32, i32
  }
  func.func @transform_6(%arg0: i32) -> (i32, i32, i32) {
    %c0_i32 = arith.constant 0 : i32
    %c0_i32_0 = arith.constant 0 : i32
    %c0_i32_1 = arith.constant 0 : i32
    return %arg0, %c0_i32, %c0_i32_0 : i32, i32, i32
  }
}

</mosaic_0001>

<llo_original>
// kernel: tpu_custom_call.1
$region0: #{tpu_custom_call.1}
  #allocation0 [shape = 'u32[]', space=smem, size = 0x4, offset = 0x4, fixed_abs, tag = 'smem constant byte address 0x4 - core index']
  #allocation1 [shape = 'u32[144,128]{1,0:T(1,128)}', space=vmem, size = 0x12000, scoped, tag = 'internal scratch']
  %s0 = inlined_call_operand.vmem [shape: f32[2,8,64], index: 0, kind: input, shape index: {}]
  %s1 = inlined_call_operand.vmem [shape: f32[64,32], index: 1, kind: input, shape index: {}]
  %s2 = inlined_call_operand.vmem [shape: f32[1,32], index: 2, kind: input, shape index: {}]
  %s3 = inlined_call_operand.vmem [shape: f32[8,32], index: 3, kind: input, shape index: {}]
  %s4 = inlined_call_operand.vmem [shape: f32[1,32], index: 4, kind: input, shape index: {}]
  %s5 = inlined_call_operand.vmem [shape: f32[1,32], index: 5, kind: input, shape index: {}]
  %s6 = inlined_call_operand.hbm [shape: f32[2,8,32], index: 6, kind: output, shape index: {}]
  %s7 = sld [smem:[#allocation0]]
  $region57: #{tpu_custom_call.1} parent=0
    _
  %s9 = ssub.s32 1, %s7
  %s10 = scalar_select 0, %s9, %s7
  $region1: #{tpu_custom_call.1} parent=0
    #allocation2 [shape = 'u8[8192]{0}', space=vmem, size = 0x2000, scoped, tag = 'output window, operand 0']
    #allocation3 [shape = 's32[2]{0}', space=sflag, size = 0x8, scoped, tag = 'scoped memory for tpu_custom_call.1']
    %11 = vsyncpa [#allocation3], 0
    %s12 = scalar_lea.sflag [#allocation3], 1
    %13 = vsyncpa %s12, 0
    loop: start=0, step=1, limit=4
    $region2: #{tpu_custom_call.1} parent=1 // loop_pre_header
      _
    $region3: #{tpu_custom_call.1} parent=1 // loop_header
      %s15 = sphi 0, %s19
      %p16 = scmp.ge.s32.totalorder %s15, 4
      %s25 = sphi 0, %s27
      %s28 = sphi 0, %s25
      %s29 = sphi 0, %s28
      %s45 = sphi 0, %s29
      %s49 = sphi 0, %s49
      %s51 = sphi 0, %s49
      %s52 = sphi 0, %s51
      %s66 = sphi 0, %s52
      %s70 = sphi 0, %s70
      %s72 = sphi 0, %s70
      %s73 = sphi 0, %s72
      %s87 = sphi 0, %s73
      %s91 = sphi 0, %s91
      %s93 = sphi 0, %s91
      %s94 = sphi 0, %s93
      %s108 = sphi 0, %s94
      %s112 = sphi 0, %s112
      %s114 = sphi 0, %s112
      %s115 = sphi 0, %s114
      %s129 = sphi 0, %s115
      %s133 = sphi 0, %s133
      %s135 = sphi 0, %s133
      %s136 = sphi 0, %s135
      %s150 = sphi 0, %s136
      %s156 = sphi 0, %s158
      %s159 = sphi 0, %s156
      %s160 = sphi 0, %s159
      %s176 = sphi 0, %s160
    $region4: #{tpu_custom_call.1} parent=1 // loop_header_branch
      %18 = sbr.rel (%p16) target = $region8
    $region5: #{tpu_custom_call.1} parent=1 // loop_body
      %s20 = ssub.s32 %s15, 1
      %s21 = ssub.s32 %s15, 2
      %s22 = sadd.s32 %s15, 1
      %s23 = ssub.s32 %s15, %s22
      %p24 = scmp.eq.s32.totalorder %s23, 0
      %s26 = sadd.s32 %s25, 1
      %s27 = scalar_select %p24, %s25, %s26
      %p30 = pneg %p24
      %p31 = scmp.eq.s32.totalorder %s15, 1
      %p32 = por %p30, %p31
      %p33 = scmp.ne.s32.totalorder %s25, %s28
      %p34 = scmp.eq.s32.totalorder %s15, 0
      %p35 = por %p33, %p34
      %p36 = scmp.ne.s32.totalorder %s25, %s28
      %p37 = scmp.eq.s32.totalorder %s20, 1
      %p38 = por %p36, %p37
      %p39 = scmp.ne.s32.totalorder %s28, %s29
      %p40 = scmp.eq.s32.totalorder %s20, 0
      %p41 = por %p39, %p40
      %p42 = scmp.ne.s32.totalorder %s28, %s29
      %p43 = scmp.eq.s32.totalorder %s21, 1
      %p44 = por %p42, %p43
      %p46 = scmp.ne.s32.totalorder %s29, %s45
      %p47 = scmp.eq.s32.totalorder %s21, 0
      %p48 = por %p46, %p47
      %s50 = sadd.s32 %s49, 1
      %p53 = scmp.eq.s32.totalorder %s15, 1
      %p54 = scmp.ne.s32.totalorder %s49, %s51
      %p55 = scmp.eq.s32.totalorder %s15, 0
      %p56 = por %p54, %p55
      %p57 = scmp.ne.s32.totalorder %s49, %s51
      %p58 = scmp.eq.s32.totalorder %s20, 1
      %p59 = por %p57, %p58
      %p60 = scmp.ne.s32.totalorder %s51, %s52
      %p61 = scmp.eq.s32.totalorder %s20, 0
      %p62 = por %p60, %p61
      %p63 = scmp.ne.s32.totalorder %s51, %s52
      %p64 = scmp.eq.s32.totalorder %s21, 1
      %p65 = por %p63, %p64
      %p67 = scmp.ne.s32.totalorder %s52, %s66
      %p68 = scmp.eq.s32.totalorder %s21, 0
      %p69 = por %p67, %p68
      %s71 = sadd.s32 %s70, 1
      %p74 = scmp.eq.s32.totalorder %s15, 1
      %p75 = scmp.ne.s32.totalorder %s70, %s72
      %p76 = scmp.eq.s32.totalorder %s15, 0
      %p77 = por %p75, %p76
      %p78 = scmp.ne.s32.totalorder %s70, %s72
      %p79 = scmp.eq.s32.totalorder %s20, 1
      %p80 = por %p78, %p79
      %p81 = scmp.ne.s32.totalorder %s72, %s73
      %p82 = scmp.eq.s32.totalorder %s20, 0
      %p83 = por %p81, %p82
      %p84 = scmp.ne.s32.totalorder %s72, %s73
      %p85 = scmp.eq.s32.totalorder %s21, 1
      %p86 = por %p84, %p85
      %p88 = scmp.ne.s32.totalorder %s73, %s87
      %p89 = scmp.eq.s32.totalorder %s21, 0
      %p90 = por %p88, %p89
      %s92 = sadd.s32 %s91, 1
      %p95 = scmp.eq.s32.totalorder %s15, 1
      %p96 = scmp.ne.s32.totalorder %s91, %s93
      %p97 = scmp.eq.s32.totalorder %s15, 0
      %p98 = por %p96, %p97
      %p99 = scmp.ne.s32.totalorder %s91, %s93
      %p100 = scmp.eq.s32.totalorder %s20, 1
      %p101 = por %p99, %p100
      %p102 = scmp.ne.s32.totalorder %s93, %s94
      %p103 = scmp.eq.s32.totalorder %s20, 0
      %p104 = por %p102, %p103
      %p105 = scmp.ne.s32.totalorder %s93, %s94
      %p106 = scmp.eq.s32.totalorder %s21, 1
      %p107 = por %p105, %p106
      %p109 = scmp.ne.s32.totalorder %s94, %s108
      %p110 = scmp.eq.s32.totalorder %s21, 0
      %p111 = por %p109, %p110
      %s113 = sadd.s32 %s112, 1
      %p116 = scmp.eq.s32.totalorder %s15, 1
      %p117 = scmp.ne.s32.totalorder %s112, %s114
      %p118 = scmp.eq.s32.totalorder %s15, 0
      %p119 = por %p117, %p118
      %p120 = scmp.ne.s32.totalorder %s112, %s114
      %p121 = scmp.eq.s32.totalorder %s20, 1
      %p122 = por %p120, %p121
      %p123 = scmp.ne.s32.totalorder %s114, %s115
      %p124 = scmp.eq.s32.totalorder %s20, 0
      %p125 = por %p123, %p124
      %p126 = scmp.ne.s32.totalorder %s114, %s115
      %p127 = scmp.eq.s32.totalorder %s21, 1
      %p128 = por %p126, %p127
      %p130 = scmp.ne.s32.totalorder %s115, %s129
      %p131 = scmp.eq.s32.totalorder %s21, 0
      %p132 = por %p130, %p131
      %s134 = sadd.s32 %s133, 1
      %p137 = scmp.eq.s32.totalorder %s15, 1
      %p138 = scmp.ne.s32.totalorder %s133, %s135
      %p139 = scmp.eq.s32.totalorder %s15, 0
      %p140 = por %p138, %p139
      %p141 = scmp.ne.s32.totalorder %s133, %s135
      %p142 = scmp.eq.s32.totalorder %s20, 1
      %p143 = por %p141, %p142
      %p144 = scmp.ne.s32.totalorder %s135, %s136
      %p145 = scmp.eq.s32.totalorder %s20, 0
      %p146 = por %p144, %p145
      %p147 = scmp.ne.s32.totalorder %s135, %s136
      %p148 = scmp.eq.s32.totalorder %s21, 1
      %p149 = por %p147, %p148
      %p151 = scmp.ne.s32.totalorder %s136, %s150
      %p152 = scmp.eq.s32.totalorder %s21, 0
      %p153 = por %p151, %p152
      %s154 = ssub.s32 %s15, %s22
      %p155 = scmp.eq.s32.totalorder %s154, 0
      %s157 = sadd.s32 %s156, 1
      %s158 = scalar_select %p155, %s156, %s157
      %p161 = pneg %p155
      %p162 = scmp.eq.s32.totalorder %s15, 1
      %p163 = por %p161, %p162
      %p164 = scmp.ne.s32.totalorder %s156, %s159
      %p165 = scmp.eq.s32.totalorder %s15, 0
      %p166 = por %p164, %p165
      %p167 = scmp.ne.s32.totalorder %s156, %s159
      %p168 = scmp.eq.s32.totalorder %s20, 1
      %p169 = por %p167, %p168
      %p170 = scmp.ne.s32.totalorder %s159, %s160
      %p171 = scmp.eq.s32.totalorder %s20, 0
      %p172 = por %p170, %p171
      %p173 = scmp.ne.s32.totalorder %s159, %s160
      %p174 = scmp.eq.s32.totalorder %s21, 1
      %p175 = por %p173, %p174
      %p177 = scmp.ne.s32.totalorder %s160, %s176
      %p178 = scmp.eq.s32.totalorder %s21, 0
      %p179 = por %p177, %p178
      %p180 = scmp.le.s32.totalorder 1, %s15
      %p181 = scmp.lt.s32.totalorder %s15, 3
      %p182 = pnand %p180, %p181
      %p183 = pneg %p182
      // Predicated region
      $region9: #{tpu_custom_call.1} parent=5 // pred_check
        _
      $region10: #{tpu_custom_call.1} parent=5 // pred_check_branch
        %185 = sbr.rel (%p182) target = $region12
      $region11: #{tpu_custom_call.1} parent=5 // pred_region
        %s186 = ssub.s32 %s15, 1
        // Predicated region
        $region13: #{tpu_custom_call.1} parent=11 // pred_check
          %p187 = pneg %p62
        $region14: #{tpu_custom_call.1} parent=11 // pred_check_branch
          %189 = sbr.rel (%p187) target = $region16
        $region15: #{tpu_custom_call.1} parent=11 // pred_region
          _
        $region16: #{tpu_custom_call.1} parent=11 // pred_fallthru
          _
        // Predicated region
        $region17: #{tpu_custom_call.1} parent=11 // pred_check
          %p190 = pneg %p83
        $region18: #{tpu_custom_call.1} parent=11 // pred_check_branch
          %192 = sbr.rel (%p190) target = $region20
        $region19: #{tpu_custom_call.1} parent=11 // pred_region
          _
        $region20: #{tpu_custom_call.1} parent=11 // pred_fallthru
          _
        // Predicated region
        $region21: #{tpu_custom_call.1} parent=11 // pred_check
          %p193 = pneg %p104
        $region22: #{tpu_custom_call.1} parent=11 // pred_check_branch
          %195 = sbr.rel (%p193) target = $region24
        $region23: #{tpu_custom_call.1} parent=11 // pred_region
          _
        $region24: #{tpu_custom_call.1} parent=11 // pred_fallthru
          _
        // Predicated region
        $region25: #{tpu_custom_call.1} parent=11 // pred_check
          %p196 = pneg %p125
        $region26: #{tpu_custom_call.1} parent=11 // pred_check_branch
          %198 = sbr.rel (%p196) target = $region28
        $region27: #{tpu_custom_call.1} parent=11 // pred_region
          _
        $region28: #{tpu_custom_call.1} parent=11 // pred_fallthru
          _
        // Predicated region
        $region29: #{tpu_custom_call.1} parent=11 // pred_check
          %p199 = pneg %p146
        $region30: #{tpu_custom_call.1} parent=11 // pred_check_branch
          %201 = sbr.rel (%p199) target = $region32
        $region31: #{tpu_custom_call.1} parent=11 // pred_region
          _
        $region32: #{tpu_custom_call.1} parent=11 // pred_fallthru
          _
      $region12: #{tpu_custom_call.1} parent=5 // pred_fallthru
        _
      %p202 = scmp.lt.s32.totalorder %s15, 2
      // Predicated region
      $region33: #{tpu_custom_call.1} parent=5 // pred_check
        %p203 = pneg %p202
      $region34: #{tpu_custom_call.1} parent=5 // pred_check_branch
        %205 = sbr.rel (%p203) target = $region36
      $region35: #{tpu_custom_call.1} parent=5 // pred_region
        // Predicated region
        $region37: #{tpu_custom_call.1} parent=35 // pred_check
          %p206 = pneg %p35
        $region38: #{tpu_custom_call.1} parent=35 // pred_check_branch
          %208 = sbr.rel (%p206) target = $region40
        $region39: #{tpu_custom_call.1} parent=35 // pred_region
          %p209 = scmp.lt.s32.totalorder %s15, 1
          %s210 = scalar_select %p209, %s15, 1
          %s211 = smul.addr %s210, 8
          %s212 = scalar_lea.vmem %s0, %s211
        $region40: #{tpu_custom_call.1} parent=35 // pred_fallthru
          _
      $region36: #{tpu_custom_call.1} parent=5 // pred_fallthru
        _
      %p213 = scmp.le.s32.totalorder 1, %s15
      %p214 = scmp.lt.s32.totalorder %s15, 3
      %p215 = pnand %p213, %p214
      %p216 = pneg %p215
      // Predicated region
      $region41: #{tpu_custom_call.1} parent=5 // pred_check
        _
      $region42: #{tpu_custom_call.1} parent=5 // pred_check_branch
        %218 = sbr.rel (%p215) target = $region44
      $region43: #{tpu_custom_call.1} parent=5 // pred_region
        %s219 = ssub.s32 %s15, 1
        %p220 = scmp.lt.s32.totalorder %s20, 1
        %s221 = scalar_select %p220, %s20, 1
        %s222 = smul.addr %s221, 8
        %s223 = scalar_lea.vmem %s0, %s222
        %p224 = pneg %p41
        %p225 = pneg %p38
        %p226 = pneg %p62
        %p227 = pneg %p59
        %p228 = pneg %p83
        %p229 = pneg %p80
        %p230 = pneg %p104
        %p231 = pneg %p101
        %p232 = pneg %p125
        %p233 = pneg %p122
        %p234 = pneg %p146
        %p235 = pneg %p143
        %p236 = pneg %p172
        %p237 = pneg %p169
        %s238 = sand.u32 %s159, 1
        %s239 = scalar_lea.sflag [#allocation3], %s238
        %s240 = sand.u32 %s159, 1
        %s241 = smul.addr %s240, 8
        %s242 = scalar_lea.vmem [#allocation2], %s241
        %p243 = scmp.lt.s32.totalorder %s20, 1
        %s244 = scalar_select %p243, %s20, 1
        %s245 = smul.addr %s244, 8
        %s246 = scalar_lea.vmem %s0, %s245
        %v247 = vld [vmem:[%s246] sm:$0xff]
        %v248 = vld [vmem:[%s1] sm:$0xff]
        %v249 = vld [vmem:[%s1 + $0x8] sm:$0xff]
        %v250 = vld [vmem:[%s1 + $0x10] sm:$0xff]
        %v251 = vld [vmem:[%s1 + $0x18] sm:$0xff]
        %v252 = vld [vmem:[%s1 + $0x20] sm:$0xff]
        %v253 = vld [vmem:[%s1 + $0x28] sm:$0xff]
        %v254 = vld [vmem:[%s1 + $0x30] sm:$0xff]
        %v255 = vld [vmem:[%s1 + $0x38] sm:$0xff]
        %v256 = vld [vmem:[%s2] sm:$0x1]
        %v258 = vlaneseq
        %v259 = vshrl.u32 %v258, 7
        %v260 = vsub.s32 0, %v259
        %v261 = vrot.slane %v256, %v260
        %vm263 = vcmask 523264
        %v265 = vsel %vm263, %v247, 0
        %267 = vmatprep.subr.mxu0 0.0
        %268 = vmatpush1.msra.mxu0 %v248
        %269 = vmatprep.subr.mxu0 0.0
        %270 = vmatpush1.msra.mxu0 %v249
        %271 = vmatprep.subr.mxu0 0.0
        %272 = vmatpush1.msra.mxu0 %v250
        %273 = vmatprep.subr.mxu0 0.0
        %274 = vmatpush1.msra.mxu0 %v251
        %275 = vmatprep.subr.mxu0 0.0
        %276 = vmatpush1.msra.mxu0 %v252
        %277 = vmatprep.subr.mxu0 0.0
        %278 = vmatpush1.msra.mxu0 %v253
        %279 = vmatprep.subr.mxu0 0.0
        %280 = vmatpush1.msra.mxu0 %v254
        %281 = vmatprep.subr.mxu0 0.0
        %282 = vmatpush1.msra.mxu0 %v255
        %283 = vmatprep.subr.mxu0 0.0
        %284 = vmatpush1.msra.mxu0 0.0
        %285 = vmatprep.subr.mxu0 0.0
        %286 = vmatpush1.msra.mxu0 0.0
        %287 = vmatprep.subr.mxu0 0.0
        %288 = vmatpush1.msra.mxu0 0.0
        %289 = vmatprep.subr.mxu0 0.0
        %290 = vmatpush1.msra.mxu0 0.0
        %291 = vmatprep.subr.mxu0 0.0
        %292 = vmatpush1.msra.mxu0 0.0
        %293 = vmatprep.subr.mxu0 0.0
        %294 = vmatpush1.msra.mxu0 0.0
        %295 = vmatprep.subr.mxu0 0.0
        %296 = vmatpush1.msra.mxu0 0.0
        %297 = vmatprep.subr.mxu0 0.0
        %298 = vmatpush1.msra.mxu0 0.0
        %299 = vmatprep.subr.mxu0 0.0
        %300 = vmatpush1.msra.mxu0 0.0
        %301 = vmatprep.subr.mxu0 0.0
        %302 = vmatpush1.msra.mxu0 0.0
        %303 = vmatprep.subr.mxu0 0.0
        %304 = vmatpush1.msra.mxu0 0.0
        %305 = vmatprep.subr.mxu0 0.0
        %306 = vmatpush1.msra.mxu0 0.0
        %307 = vmatprep.subr.mxu0 0.0
        %308 = vmatpush1.msra.mxu0 0.0
        %309 = vmatprep.subr.mxu0 0.0
        %310 = vmatpush1.msra.mxu0 0.0
        %311 = vmatprep.subr.mxu0 0.0
        %312 = vmatpush1.msra.mxu0 0.0
        %313 = vmatprep.subr.mxu0 0.0
        %314 = vmatpush1.msra.mxu0 0.0
        %315 = vmatprep.subr.mxu0 0.0
        %316 = vmatpush1.msra.mxu0 0.0
        %317 = vmatprep.subr.mxu0 0.0
        %318 = vmatpush1.msra.mxu0 0.0
        %319 = vmatprep.subr.mxu0 0.0
        %320 = vmatpush1.msra.mxu0 0.0
        %321 = vmatprep.subr.mxu0 0.0
        %322 = vmatpush1.msra.mxu0 0.0
        %323 = vmatprep.subr.mxu0 0.0
        %324 = vmatpush1.msra.mxu0 0.0
        %325 = vmatprep.subr.mxu0 0.0
        %326 = vmatpush1.msra.mxu0 0.0
        %327 = vmatprep.subr.mxu0 0.0
        %328 = vmatpush1.msra.mxu0 0.0
        %329 = vmatprep.subr.mxu0 0.0
        %330 = vmatpush1.msra.mxu0 0.0
        %331 = vmatprep.mubr.f32.mxu0 0.0
        %332 = vmatmul.mubr.f32.gmra.mrb[0].mxu0 %v265
        %v333 = vpop.f32.mrb[0].mxu0
        %v334 = vadd.f32 %v261, %v333
        %v335 = vpop.f32.mrb[0].mxu0
        %336 = vdwg.mxu0
        %v337 = vld [vmem:[%s3] sm:$0xff]
        %v338 = vadd.f32 %v334, %v337
        %v339 = vld [vmem:[%s4] sm:$0x1]
        %v340 = vld [vmem:[%s5] sm:$0x1]
        %vm341 = vcmask 261120
        %v342 = vsel %vm341, %v338, 0.0
        %343 = vadd.xlane.f32.xlu0 %v342
        %v344 = vpop.xlane.xlu0 %343
        %v345 = vrcp.pop 32.0
        %v346 = vmul.f32 %v344, %v345
        %v347 = vsub.f32 %v338, %v346
        %v348 = vmul.f32 %v347, %v347
        %v349 = vsel %vm341, %v348, 0.0
        %350 = vadd.xlane.f32.xlu0 %v349
        %v351 = vpop.xlane.xlu0 %350
        %v352 = vmul.f32 %v351, %v345
        %v353 = vadd.f32 %v352, 1e-06
        %v354 = vrsqrt.pop %v353
        %v355 = vmul.f32 %v347, %v354
        %v357 = vlaneseq
        %v358 = vshrl.u32 %v357, 7
        %v359 = vsub.s32 0, %v358
        %v360 = vrot.slane %v339, %v359
        %v362 = vmul.f32 %v355, %v360
        %v364 = vlaneseq
        %v365 = vshrl.u32 %v364, 7
        %v366 = vsub.s32 0, %v365
        %v367 = vrot.slane %v340, %v366
        %v369 = vadd.f32 %v362, %v367
        %370 = vst.msk [vmem:[%s242] sm:$0xff] %vm341, %v369
        %s371 = sand.u32 %s159, 1
        %s372 = scalar_lea.sflag [#allocation3], %s371
        %s373 = sand.u32 %s159, 1
        %s374 = smul.addr %s373, 8
        %s375 = scalar_lea.vmem [#allocation2], %s374
        // Predicated region
        $region45: #{tpu_custom_call.1} parent=43 // pred_check
          %p376 = pneg %p169
        $region46: #{tpu_custom_call.1} parent=43 // pred_check_branch
          %378 = sbr.rel (%p376) target = $region48
        $region47: #{tpu_custom_call.1} parent=43 // pred_region
          %s380 = ssub.s32 128, 128
          %381 = vsyncadd %s372, %s380
          %s382 = smul.addr %s20, 128
          %s383 = scalar_lea.hbm %s6, %s382
          %s385 = sshll.u32 %s375, 4
          %s386 = int_to_ptr.vmem [resolvable:$true] %s385
          %388 = dma.vmem_to_hbm [thread:$0]  %s386, 128, %s383, %s372
        $region48: #{tpu_custom_call.1} parent=43 // pred_fallthru
          _
      $region44: #{tpu_custom_call.1} parent=5 // pred_fallthru
        _
      %p389 = scmp.le.s32.totalorder 2, %s15
      // Predicated region
      $region49: #{tpu_custom_call.1} parent=5 // pred_check
        %p390 = pneg %p389
      $region50: #{tpu_custom_call.1} parent=5 // pred_check_branch
        %392 = sbr.rel (%p390) target = $region52
      $region51: #{tpu_custom_call.1} parent=5 // pred_region
        %s393 = ssub.s32 %s15, 2
        // Predicated region
        $region53: #{tpu_custom_call.1} parent=51 // pred_check
          %p394 = pneg %p175
        $region54: #{tpu_custom_call.1} parent=51 // pred_check_branch
          %396 = sbr.rel (%p394) target = $region56
        $region55: #{tpu_custom_call.1} parent=51 // pred_region
          %s397 = sand.u32 %s160, 1
          %s398 = scalar_lea.sflag [#allocation3], %s397
          %s399 = sand.u32 %s160, 1
          %s400 = smul.addr %s399, 8
          %s401 = scalar_lea.vmem [#allocation2], %s400
          %402 = dma.done %s398, 128
        $region56: #{tpu_custom_call.1} parent=51 // pred_fallthru
          _
      $region52: #{tpu_custom_call.1} parent=5 // pred_fallthru
        _
    $region6: #{tpu_custom_call.1} parent=1 // loop_footer
      %s19 = sadd.s32 1, %s15
    $region7: #{tpu_custom_call.1} parent=1 // loop_footer_branch
      %14 = sbr.rel target = $region3
    $region8: #{tpu_custom_call.1} parent=1 // loop_exit
      _
    %403 = vsyncpa [#allocation3], 1
    %s404 = scalar_lea.sflag [#allocation3], 1
    %405 = vsyncpa %s404, 1

</llo_original>
